<compile_context>
chip_gen: v7x
topology: tpu7x:2x2x1
jax: 0.10.0
libtpu: 0.0.40
codegen_flags: <defaults>
</compile_context>

<pallas_src>
import functools

import jax
import jax.numpy as jnp
from jax import lax
from jax.experimental import pallas as pl
from jax.experimental.pallas import tpu as pltpu


def _combined_loss_kernel(st_ref, feats_ref, out_ref, *,
                          alpha, margin, bn, ba, inv_b, inv_bn, inv_ba):
    # ---------------- BCE with logits (mean reduction) -------------------
    st = st_ref[0].astype(jnp.float32)          # (B, 2): col 0 = logits, col 1 = targets
    x = st[:, 0:1]
    t = st[:, 1:2]
    # torch BCEWithLogitsLoss: max(x,0) - x*t + log(1 + exp(-|x|))
    # NOTE: keep log(1 + z) (guaranteed Mosaic lowering); diff vs log1p ~ f32 eps.
    bce_elem = jnp.maximum(x, 0.0) - x * t + jnp.log(1.0 + jnp.exp(-jnp.abs(x)))
    bce = jnp.sum(bce_elem) * inv_b             # scalar

    # ---------------- Triplet loss over pairwise L2 distances ------------
    f = feats_ref[0].astype(jnp.float32)        # (B, D)
    B = bn + ba
    D = f.shape[1]

    f2 = f * f
    sq_col = jnp.sum(f2, axis=-1, keepdims=True)                     # (B, 1), lane reduce
    # Lane-oriented row of squared norms via a tiny MXU pass (no sq.T / XLU vxpose).
    ones_row = jnp.ones((1, D), jnp.float32)
    sq_row = lax.dot_general(ones_row, f2, (((1,), (1,)), ((), ())),
                             preferred_element_type=jnp.float32)     # (1, B)
    g = lax.dot_general(f, f, (((1,), (1,)), ((), ())),
                        preferred_element_type=jnp.float32)          # (B, B) Gram
    d2 = sq_col + sq_row - 2.0 * g                                   # squared distances

    # Masked full-width reductions (no sub-tile slices); first bn rows are the
    # "normal" anchors, first bn columns are "normal", the rest "abnormal".
    row = lax.broadcasted_iota(jnp.int32, (B, B), 0)
    col = lax.broadcasted_iota(jnp.int32, (B, B), 1)
    anchor = row < bn
    normal_col = col < bn
    BIG = jnp.float32(1e30)

    max_n2 = jnp.max(jnp.where(anchor & normal_col, d2, -BIG),
                     axis=0, keepdims=True)                          # (1, B)
    min_a2 = jnp.min(jnp.where(anchor & jnp.logical_not(normal_col), d2, BIG),
                     axis=0, keepdims=True)                          # (1, B)

    # sqrt / clamp deferred to the reduced rows (monotonic, so argmax/argmin unchanged).
    max_n = jnp.sqrt(jnp.maximum(max_n2, 0.0))          # 0 in abnormal columns (-BIG -> 0)
    hinge = jnp.maximum(margin - jnp.sqrt(jnp.maximum(min_a2, 0.0)), 0.0)
    # normal columns: sqrt(BIG) >> margin  -> hinge == 0 there.
    trip = jnp.sum(max_n) * inv_bn + jnp.sum(hinge) * inv_ba

    # ---------------- Lane-dense (8,128) output block ---------------------
    sub = lax.broadcasted_iota(jnp.int32, (8, 128), 0)
    lane = lax.broadcasted_iota(jnp.int32, (8, 128), 1)
    out_blk = jnp.where((sub == 0) & (lane == 0), bce, 0.0)
    out_blk = out_blk + jnp.where((sub == 0) & (lane == 1), alpha * trip, 0.0)
    out_ref[0] = out_blk


def _pallas_combined_loss(st, feats, alpha, margin):
    """st: (G, B, 2) f32 [logits | targets]; feats: (G, B, D). Returns (G, 8, 128)."""
    G, B, D = feats.shape
    bn = B // 2
    ba = B - bn

    kernel = functools.partial(
        _combined_loss_kernel,
        alpha=float(alpha), margin=float(margin), bn=bn, ba=ba,
        inv_b=1.0 / B, inv_bn=1.0 / bn, inv_ba=1.0 / ba)

    cost = pl.CostEstimate(
        flops=G * (2 * B * B * D + 2 * B * D + 16 * B * B),
        transcendentals=G * 4 * B,
        bytes_accessed=G * (B * 2 * 4 + B * D * 4 + 8 * 128 * 4))

    return pl.pallas_call(
        kernel,
        out_shape=jax.ShapeDtypeStruct((G, 8, 128), jnp.float32),
        grid=(G,),
        in_specs=[
            pl.BlockSpec((1, B, 2), lambda g: (g, 0, 0)),   # merged scores+targets
            pl.BlockSpec((1, B, D), lambda g: (g, 0, 0)),   # features
        ],
        out_specs=pl.BlockSpec((1, 8, 128), lambda g: (g, 0, 0)),
        compiler_params=pltpu.CompilerParams(
            dimension_semantics=("parallel",)),              # dual-TC sharding on v7x
        cost_estimate=cost,
    )(st, feats)


@functools.partial(jax.jit, static_argnames=("alpha", "margin"))
def combined_loss_batched(scores, feats, targets, alpha=0.01, margin=100.0):
    """Batched over G independent loss groups.

    scores: (G, B) or (G, B, 1); feats: (G, B, D); targets: (G, B).
    Returns (bce: (G,), alpha*triplet: (G,)) as f32.
    """
    G, B, D = feats.shape
    st = jnp.stack([scores.reshape(G, B).astype(jnp.float32),
                    targets.reshape(G, B).astype(jnp.float32)], axis=-1)  # (G, B, 2)
    out = _pallas_combined_loss(st, feats, alpha, margin)
    return out[:, 0, 0], out[:, 0, 1]


@functools.partial(jax.jit, static_argnames=("alpha", "margin"))
def combined_loss(scores, feats, targets, alpha=0.01, margin=100.0):
    """Single-group path (module semantics). Returns two f32 scalars."""
    B, D = feats.shape
    st = jnp.stack([scores.reshape(1, B).astype(jnp.float32),
                    targets.reshape(1, B).astype(jnp.float32)], axis=-1)  # (1, B, 2)
    out = _pallas_combined_loss(st, feats.reshape(1, B, D), alpha, margin)
    return out[0, 0, 0], out[0, 0, 1]


def _reference(scores, feats, targets, alpha=0.01, margin=100.0):
    # pure-JAX reference (matches torch semantics) for sanity checking
    x = scores.reshape(-1).astype(jnp.float32)
    t = targets.reshape(-1).astype(jnp.float32)
    bce = jnp.mean(jnp.maximum(x, 0.0) - x * t + jnp.log1p(jnp.exp(-jnp.abs(x))))
    B = feats.shape[0]
    n, a = feats[:B // 2], feats[B // 2:]
    d_nn = jnp.sqrt(jnp.maximum(
        jnp.sum((n[:, None, :] - n[None, :, :]) ** 2, -1), 0.0))
    d_na = jnp.sqrt(jnp.maximum(
        jnp.sum((n[:, None, :] - a[None, :, :]) ** 2, -1), 0.0))
    trip = jnp.mean(jnp.max(d_nn, axis=0)) + jnp.mean(
        jnp.maximum(margin - jnp.min(d_na, axis=0), 0.0))
    return bce, alpha * trip


if __name__ == "__main__":
    key = jax.random.PRNGKey(0)
    k1, k2, k3 = jax.random.split(key, 3)

    # ---- single group (exactly the torch module's forward) ----
    B, D = 8, 32
    scores = jax.random.normal(k1, (B, 1), dtype=jnp.float32)          # logits
    feats = jax.random.normal(k2, (B, D), dtype=jnp.float32) * 3.0     # features
    targets = jax.random.bernoulli(k3, 0.5, (B,)).astype(jnp.float32)  # {0,1}

    loss_bce, loss_trip = combined_loss(scores, feats, targets)
    jax.block_until_ready((loss_bce, loss_trip))

    ref_bce, ref_trip = _reference(scores, feats, targets)
    assert jnp.allclose(loss_bce, ref_bce, atol=1e-4, rtol=1e-4), (loss_bce, ref_bce)
    assert jnp.allclose(loss_trip, ref_trip, atol=1e-4, rtol=1e-4), (loss_trip, ref_trip)

    # ---- batched grid path (amortizes launch cost, parallel over TCs) ----
    G = 4
    kg1, kg2, kg3 = jax.random.split(jax.random.PRNGKey(1), 3)
    scores_g = jax.random.normal(kg1, (G, B), dtype=jnp.float32)
    feats_g = jax.random.normal(kg2, (G, B, D), dtype=jnp.float32) * 3.0
    targets_g = jax.random.bernoulli(kg3, 0.5, (G, B)).astype(jnp.float32)

    bce_g, trip_g = combined_loss_batched(scores_g, feats_g, targets_g)
    jax.block_until_ready((bce_g, trip_g))
    for gi in range(G):
        rb, rt = _reference(scores_g[gi], feats_g[gi], targets_g[gi])
        assert jnp.allclose(bce_g[gi], rb, atol=1e-4, rtol=1e-4), (gi, bce_g[gi], rb)
        assert jnp.allclose(trip_g[gi], rt, atol=1e-4, rtol=1e-4), (gi, trip_g[gi], rt)

    print("KERNEL_OK")
</pallas_src>

<mosaic_0001>
module attributes {stable_mosaic.version = 11 : i64} {
  func.func @_combined_loss_kernel(%arg0: i32, %arg1: memref<1x8x2xf32, #tpu.memory_space<vmem>>, %arg2: memref<1x8x32xf32, #tpu.memory_space<vmem>>, %arg3: memref<1x8x128xf32, #tpu.memory_space<vmem>>) attributes {dimension_semantics = [#tpu.dimension_semantics<parallel>], iteration_bounds = array<i64: 1>, scalar_prefetch = 0 : i64, scratch_operands = 0 : i64, tpu.core_type = #tpu.core_type<tc>, window_params = [{transform_indices = @transform_0, window_bounds = array<i64: 1, 8, 2>}, {transform_indices = @transform_1, window_bounds = array<i64: 1, 8, 32>}, {transform_indices = @transform_2, window_bounds = array<i64: 1, 8, 128>}]} {
    %c0 = arith.constant 0 : index
    %c0_0 = arith.constant 0 : index
    %c0_1 = arith.constant 0 : index
    %0 = vector.load %arg1[%c0, %c0_0, %c0_1] : memref<1x8x2xf32, #tpu.memory_space<vmem>>, vector<1x8x2xf32>
    %1 = vector.shape_cast %0 : vector<1x8x2xf32> to vector<8x2xf32>
    %2 = vector.extract_strided_slice %1 {offsets = [0, 0], sizes = [8, 1], strides = [1, 1]} : vector<8x2xf32> to vector<8x1xf32>
    %3 = vector.extract_strided_slice %1 {offsets = [0, 1], sizes = [8, 1], strides = [1, 1]} : vector<8x2xf32> to vector<8x1xf32>
    %cst = arith.constant 0.000000e+00 : f32
    %4 = vector.broadcast %cst : f32 to vector<8x1xf32>
    %5 = arith.maximumf %2, %4 : vector<8x1xf32>
    %6 = arith.mulf %2, %3 : vector<8x1xf32>
    %7 = arith.subf %5, %6 : vector<8x1xf32>
    %8 = math.absf %2 : vector<8x1xf32>
    %cst_2 = arith.constant 0.000000e+00 : f32
    %9 = vector.broadcast %cst_2 : f32 to vector<8x1xf32>
    %10 = arith.subf %9, %8 : vector<8x1xf32>
    %11 = math.exp %10 : vector<8x1xf32>
    %cst_3 = arith.constant 1.000000e+00 : f32
    %12 = vector.broadcast %cst_3 : f32 to vector<8x1xf32>
    %13 = arith.addf %12, %11 : vector<8x1xf32>
    %14 = math.log %13 : vector<8x1xf32>
    %15 = arith.addf %7, %14 : vector<8x1xf32>
    %16 = vector.shape_cast %15 : vector<8x1xf32> to vector<1x8x1xf32>
    %cst_4 = arith.constant dense<0.000000e+00> : vector<1xf32>
    %17 = vector.multi_reduction <add>, %16, %cst_4 [1, 2] : vector<1x8x1xf32> to vector<1xf32>
    %18 = vector.shape_cast %17 : vector<1xf32> to vector<1x1x1xf32>
    %19 = vector.extract %18[0, 0, 0] : f32 from vector<1x1x1xf32>
    %cst_5 = arith.constant 1.250000e-01 : f32
    %20 = arith.mulf %19, %cst_5 : f32
    %c0_6 = arith.constant 0 : index
    %c0_7 = arith.constant 0 : index
    %c0_8 = arith.constant 0 : index
    %21 = vector.load %arg2[%c0_6, %c0_7, %c0_8] : memref<1x8x32xf32, #tpu.memory_space<vmem>>, vector<1x8x32xf32>
    %22 = vector.shape_cast %21 : vector<1x8x32xf32> to vector<8x32xf32>
    %23 = arith.mulf %22, %22 : vector<8x32xf32>
    %cst_9 = arith.constant dense<0.000000e+00> : vector<8xf32>
    %24 = vector.multi_reduction <add>, %23, %cst_9 [1] : vector<8x32xf32> to vector<8xf32>
    %25 = vector.shape_cast %24 : vector<8xf32> to vector<8x1xf32>
    %cst_10 = arith.constant 1.000000e+00 : f32
    %26 = vector.broadcast %cst_10 : f32 to vector<1x32xf32>
    %cst_11 = arith.constant dense<0.000000e+00> : vector<1x8xf32>
    %27 = tpu.matmul %26, %23, %cst_11 {dimension_numbers = #tpu.dot_dimension_numbers<[1], [1], [0], [0], [0, 0, 1, 0], [], []>} : vector<1x32xf32>, vector<8x32xf32>, vector<1x8xf32> -> vector<1x8xf32>
    %cst_12 = arith.constant dense<0.000000e+00> : vector<8x8xf32>
    %28 = tpu.matmul %22, %22, %cst_12 {dimension_numbers = #tpu.dot_dimension_numbers<[1], [1], [0], [0], [0, 0, 1, 0], [], []>} : vector<8x32xf32>, vector<8x32xf32>, vector<8x8xf32> -> vector<8x8xf32>
    %29 = vector.broadcast %25 : vector<8x1xf32> to vector<8x8xf32>
    %30 = vector.broadcast %27 : vector<1x8xf32> to vector<8x8xf32>
    %31 = arith.addf %29, %30 : vector<8x8xf32>
    %cst_13 = arith.constant 2.000000e+00 : f32
    %32 = vector.broadcast %cst_13 : f32 to vector<8x8xf32>
    %33 = arith.mulf %32, %28 : vector<8x8xf32>
    %34 = arith.subf %31, %33 : vector<8x8xf32>
    %35 = tpu.iota {dimensions = array<i32: 0>} : vector<8x8xi32>
    %36 = tpu.iota {dimensions = array<i32: 1>} : vector<8x8xi32>
    %c4_i32 = arith.constant 4 : i32
    %37 = vector.broadcast %c4_i32 : i32 to vector<8x8xi32>
    %38 = arith.cmpi slt, %35, %37 : vector<8x8xi32>
    %c4_i32_14 = arith.constant 4 : i32
    %39 = vector.broadcast %c4_i32_14 : i32 to vector<8x8xi32>
    %40 = arith.cmpi slt, %36, %39 : vector<8x8xi32>
    %41 = arith.andi %38, %40 : vector<8x8xi1>
    %cst_15 = arith.constant 0.000000e+00 : f32
    %cst_16 = arith.constant 1.000000e+30 : f32
    %42 = arith.subf %cst_15, %cst_16 : f32
    %43 = vector.broadcast %42 : f32 to vector<8x8xf32>
    %44 = arith.select %41, %34, %43 : vector<8x8xi1>, vector<8x8xf32>
    %cst_17 = arith.constant dense<0xFF800000> : vector<8xf32>
    %45 = vector.multi_reduction <maximumf>, %44, %cst_17 [0] : vector<8x8xf32> to vector<8xf32>
    %46 = vector.shape_cast %45 : vector<8xf32> to vector<1x8xf32>
    %cst_18 = arith.constant dense<true> : vector<8x8xi1>
    %47 = arith.xori %40, %cst_18 : vector<8x8xi1>
    %48 = arith.andi %38, %47 : vector<8x8xi1>
    %cst_19 = arith.constant 1.000000e+30 : f32
    %49 = vector.broadcast %cst_19 : f32 to vector<8x8xf32>
    %50 = arith.select %48, %34, %49 : vector<8x8xi1>, vector<8x8xf32>
    %cst_20 = arith.constant dense<0x7F800000> : vector<8xf32>
    %51 = vector.multi_reduction <minimumf>, %50, %cst_20 [0] : vector<8x8xf32> to vector<8xf32>
    %52 = vector.shape_cast %51 : vector<8xf32> to vector<1x8xf32>
    %cst_21 = arith.constant 0.000000e+00 : f32
    %53 = vector.broadcast %cst_21 : f32 to vector<1x8xf32>
    %54 = arith.maximumf %46, %53 : vector<1x8xf32>
    %55 = math.sqrt %54 : vector<1x8xf32>
    %cst_22 = arith.constant 0.000000e+00 : f32
    %56 = vector.broadcast %cst_22 : f32 to vector<1x8xf32>
    %57 = arith.maximumf %52, %56 : vector<1x8xf32>
    %58 = math.sqrt %57 : vector<1x8xf32>
    %cst_23 = arith.constant 1.000000e+02 : f32
    %59 = vector.broadcast %cst_23 : f32 to vector<1x8xf32>
    %60 = arith.subf %59, %58 : vector<1x8xf32>
    %cst_24 = arith.constant 0.000000e+00 : f32
    %61 = vector.broadcast %cst_24 : f32 to vector<1x8xf32>
    %62 = arith.maximumf %60, %61 : vector<1x8xf32>
    %63 = vector.shape_cast %55 : vector<1x8xf32> to vector<1x1x8xf32>
    %cst_25 = arith.constant dense<0.000000e+00> : vector<1xf32>
    %64 = vector.multi_reduction <add>, %63, %cst_25 [1, 2] : vector<1x1x8xf32> to vector<1xf32>
    %65 = vector.shape_cast %64 : vector<1xf32> to vector<1x1x1xf32>
    %66 = vector.extract %65[0, 0, 0] : f32 from vector<1x1x1xf32>
    %cst_26 = arith.constant 2.500000e-01 : f32
    %67 = arith.mulf %66, %cst_26 : f32
    %68 = vector.shape_cast %62 : vector<1x8xf32> to vector<1x1x8xf32>
    %cst_27 = arith.constant dense<0.000000e+00> : vector<1xf32>
    %69 = vector.multi_reduction <add>, %68, %cst_27 [1, 2] : vector<1x1x8xf32> to vector<1xf32>
    %70 = vector.shape_cast %69 : vector<1xf32> to vector<1x1x1xf32>
    %71 = vector.extract %70[0, 0, 0] : f32 from vector<1x1x1xf32>
    %cst_28 = arith.constant 2.500000e-01 : f32
    %72 = arith.mulf %71, %cst_28 : f32
    %73 = arith.addf %67, %72 : f32
    %74 = tpu.iota {dimensions = array<i32: 0>} : vector<8x128xi32>
    %75 = tpu.iota {dimensions = array<i32: 1>} : vector<8x128xi32>
    %c0_i32 = arith.constant 0 : i32
    %76 = vector.broadcast %c0_i32 : i32 to vector<8x128xi32>
    %77 = arith.cmpi eq, %74, %76 : vector<8x128xi32>
    %c0_i32_29 = arith.constant 0 : i32
    %78 = vector.broadcast %c0_i32_29 : i32 to vector<8x128xi32>
    %79 = arith.cmpi eq, %75, %78 : vector<8x128xi32>
    %80 = arith.andi %77, %79 : vector<8x128xi1>
    %cst_30 = arith.constant 0.000000e+00 : f32
    %81 = vector.broadcast %20 : f32 to vector<8x128xf32>
    %82 = vector.broadcast %cst_30 : f32 to vector<8x128xf32>
    %83 = arith.select %80, %81, %82 : vector<8x128xi1>, vector<8x128xf32>
    %c0_i32_31 = arith.constant 0 : i32
    %84 = vector.broadcast %c0_i32_31 : i32 to vector<8x128xi32>
    %85 = arith.cmpi eq, %74, %84 : vector<8x128xi32>
    %c1_i32 = arith.constant 1 : i32
    %86 = vector.broadcast %c1_i32 : i32 to vector<8x128xi32>
    %87 = arith.cmpi eq, %75, %86 : vector<8x128xi32>
    %88 = arith.andi %85, %87 : vector<8x128xi1>
    %cst_32 = arith.constant 0.00999999977 : f32
    %89 = arith.mulf %cst_32, %73 : f32
    %cst_33 = arith.constant 0.000000e+00 : f32
    %90 = vector.broadcast %89 : f32 to vector<8x128xf32>
    %91 = vector.broadcast %cst_33 : f32 to vector<8x128xf32>
    %92 = arith.select %88, %90, %91 : vector<8x128xi1>, vector<8x128xf32>
    %93 = arith.addf %83, %92 : vector<8x128xf32>
    %c0_34 = arith.constant 0 : index
    %c0_35 = arith.constant 0 : index
    %c0_36 = arith.constant 0 : index
    %94 = vector.load %arg3[%c0_34, %c0_35, %c0_36] : memref<1x8x128xf32, #tpu.memory_space<vmem>>, vector<1x8x128xf32>
    %95 = vector.shape_cast %94 : vector<1x8x128xf32> to vector<8x128xf32>
    %96 = vector.shape_cast %93 : vector<8x128xf32> to vector<1x8x128xf32>
    tpu.vector_store %arg3[%c0_34, %c0_35, %c0_36], %96 {strides = array<i32>} : memref<1x8x128xf32, #tpu.memory_space<vmem>>, vector<1x8x128xf32>,
    return
  }
  func.func @transform_0(%arg0: i32) -> (i32, i32, i32) {
    %c0_i32 = arith.constant 0 : i32
    %c0_i32_0 = arith.constant 0 : i32
    %c0_i32_1 = arith.constant 0 : i32
    return %arg0, %c0_i32, %c0_i32_0 : i32, i32, i32
  }
  func.func @transform_1(%arg0: i32) -> (i32, i32, i32) {
    %c0_i32 = arith.constant 0 : i32
    %c0_i32_0 = arith.constant 0 : i32
    %c0_i32_1 = arith.constant 0 : i32
    return %arg0, %c0_i32, %c0_i32_0 : i32, i32, i32
  }
  func.func @transform_2(%arg0: i32) -> (i32, i32, i32) {
    %c0_i32 = arith.constant 0 : i32
    %c0_i32_0 = arith.constant 0 : i32
    %c0_i32_1 = arith.constant 0 : i32
    return %arg0, %c0_i32, %c0_i32_0 : i32, i32, i32
  }
}

</mosaic_0001>

<llo_original>
// kernel: combined_loss.1
$region0: #{combined_loss.1}
  #allocation0 [shape = 'u32[]', space=smem, size = 0x4, offset = 0x4, fixed_abs, tag = 'smem constant byte address 0x4 - core index']
  #allocation1 [shape = 'u32[144,128]{1,0:T(1,128)}', space=vmem, size = 0x12000, scoped, tag = 'internal scratch']
  %s0 = inlined_call_operand.vmem [shape: f32[1,8,2], index: 0, kind: input, shape index: {}]
  %s1 = inlined_call_operand.vmem [shape: f32[1,8,32], index: 1, kind: input, shape index: {}]
  %s2 = inlined_call_operand.vmem [shape: f32[1,8,128], index: 2, kind: output, shape index: {}]
  %s3 = sld [smem:[#allocation0]]
  $region18: #{combined_loss.1} parent=0
    _
  %s5 = ssub.s32 1, %s3
  %s6 = scalar_select 0, %s5, %s3
  // Predicated region
  $region2: #{combined_loss.1} parent=0 // pred_check
    _
  $region3: #{combined_loss.1} parent=0 // pred_check_branch
    %8 = sbr.rel (0) target = $region5
  $region4: #{combined_loss.1} parent=0 // pred_region
    _
  $region5: #{combined_loss.1} parent=0 // pred_fallthru
    _
  // Predicated region
  $region6: #{combined_loss.1} parent=0 // pred_check
    _
  $region7: #{combined_loss.1} parent=0 // pred_check_branch
    %10 = sbr.rel (0) target = $region9
  $region8: #{combined_loss.1} parent=0 // pred_region
    _
  $region9: #{combined_loss.1} parent=0 // pred_fallthru
    _
  %v11 = vld [vmem:[%s0] sm:$0xff]
  %v12 = vmax.f32 %v11, 0.0
  %14 = vrot.lane.b32.xlu0 %v11, 127
  %v15 = vpop.permute.xlu0 %14
  %v17 = vmul.f32 %v11, %v15
  %v18 = vsub.f32 %v12, %v17
  %v19 = vand.u32 2147483647, %v11
  %v20 = vsub.f32 0.0, %v19
  %v21 = vmul.f32 %v20, 1.442695
  %v22 = vpow.pop %v21
  %v23 = vadd.f32 %v22, 1.0
  %v24 = vlog2.pop %v23
  %v25 = vmul.f32 %v24, 0.6931472
  %v26 = vadd.f32 %v18, %v25
  %vm27 = vcmask 7168
  %v28 = vsel %vm27, %v26, 0.0
  %29 = vadd.xlane.f32.xlu0 %v28
  %v30 = vpop.xlane.xlu0 %29
  %v31 = vrot.slane %v30, 4
  %v32 = vadd.f32 %v30, %v31
  %v33 = vrot.slane %v32, 2
  %v34 = vadd.f32 %v32, %v33
  %v35 = vrot.slane %v34, 1
  %v36 = vadd.f32 %v34, %v35
  %s37 = vtos %v36
  %s38 = smul.f32 %s37, 0.125
  %v39 = vld [vmem:[%s1] sm:$0xff]
  %v40 = vmul.f32 %v39, %v39
  %vm41 = vcmask 261120
  %v42 = vsel %vm41, %v40, 0.0
  %43 = vadd.xlane.f32.xlu0 %v42
  %v44 = vpop.xlane.xlu0 %43
  %v46 = vsel %vm41, 1.0, 0
  %v49 = vsel %vm41, %v40, 0
  %51 = vmatprep.subr.mxu0 0.0
  %52 = vmatpush1.xpose.msra.mxu0 %v49
  %53 = vmatprep.subr.mxu0 0.0
  %54 = vmatpush1.xpose.msra.mxu0 0.0
  %55 = vmatprep.subr.mxu0 0.0
  %56 = vmatpush1.xpose.msra.mxu0 0.0
  %57 = vmatprep.subr.mxu0 0.0
  %58 = vmatpush1.xpose.msra.mxu0 0.0
  %59 = vmatprep.subr.mxu0 0.0
  %60 = vmatpush1.xpose.msra.mxu0 0.0
  %61 = vmatprep.subr.mxu0 0.0
  %62 = vmatpush1.xpose.msra.mxu0 0.0
  %63 = vmatprep.subr.mxu0 0.0
  %64 = vmatpush1.xpose.msra.mxu0 0.0
  %65 = vmatprep.subr.mxu0 0.0
  %66 = vmatpush1.xpose.msra.mxu0 0.0
  %67 = vmatprep.subr.mxu0 0.0
  %68 = vmatpush1.xpose.msra.mxu0 0.0
  %69 = vmatprep.subr.mxu0 0.0
  %70 = vmatpush1.xpose.msra.mxu0 0.0
  %71 = vmatprep.subr.mxu0 0.0
  %72 = vmatpush1.xpose.msra.mxu0 0.0
  %73 = vmatprep.subr.mxu0 0.0
  %74 = vmatpush1.xpose.msra.mxu0 0.0
  %75 = vmatprep.subr.mxu0 0.0
  %76 = vmatpush1.xpose.msra.mxu0 0.0
  %77 = vmatprep.subr.mxu0 0.0
  %78 = vmatpush1.xpose.msra.mxu0 0.0
  %79 = vmatprep.subr.mxu0 0.0
  %80 = vmatpush1.xpose.msra.mxu0 0.0
  %81 = vmatprep.subr.mxu0 0.0
  %82 = vmatpush1.xpose.msra.mxu0 0.0
  %83 = vmatprep.subr.mxu0 0.0
  %84 = vmatpush1.xpose.msra.mxu0 0.0
  %85 = vmatprep.subr.mxu0 0.0
  %86 = vmatpush1.xpose.msra.mxu0 0.0
  %87 = vmatprep.subr.mxu0 0.0
  %88 = vmatpush1.xpose.msra.mxu0 0.0
  %89 = vmatprep.subr.mxu0 0.0
  %90 = vmatpush1.xpose.msra.mxu0 0.0
  %91 = vmatprep.subr.mxu0 0.0
  %92 = vmatpush1.xpose.msra.mxu0 0.0
  %93 = vmatprep.subr.mxu0 0.0
  %94 = vmatpush1.xpose.msra.mxu0 0.0
  %95 = vmatprep.subr.mxu0 0.0
  %96 = vmatpush1.xpose.msra.mxu0 0.0
  %97 = vmatprep.subr.mxu0 0.0
  %98 = vmatpush1.xpose.msra.mxu0 0.0
  %99 = vmatprep.subr.mxu0 0.0
  %100 = vmatpush1.xpose.msra.mxu0 0.0
  %101 = vmatprep.subr.mxu0 0.0
  %102 = vmatpush1.xpose.msra.mxu0 0.0
  %103 = vmatprep.subr.mxu0 0.0
  %104 = vmatpush1.xpose.msra.mxu0 0.0
  %105 = vmatprep.subr.mxu0 0.0
  %106 = vmatpush1.xpose.msra.mxu0 0.0
  %107 = vmatprep.subr.mxu0 0.0
  %108 = vmatpush1.xpose.msra.mxu0 0.0
  %109 = vmatprep.subr.mxu0 0.0
  %110 = vmatpush1.xpose.msra.mxu0 0.0
  %111 = vmatprep.subr.mxu0 0.0
  %112 = vmatpush1.xpose.msra.mxu0 0.0
  %113 = vmatprep.subr.mxu0 0.0
  %114 = vmatpush1.xpose.msra.mxu0 0.0
  %115 = vmatprep.mubr.f32.mxu0 0.0
  %116 = vmatmul.mubr.f32.gmra.mrb[0].mxu0 %v46
  %v117 = vpop.f32.mrb[0].mxu0
  %v118 = vadd.f32 0.0, %v117
  %v119 = vpop.f32.mrb[0].mxu0
  %120 = vdwg.mxu0
  %v122 = vsel %vm41, %v39, 0
  %124 = vmatprep.subr.mxu0 0.0
  %125 = vmatpush1.xpose.msra.mxu0 %v122
  %126 = vmatprep.subr.mxu0 0.0
  %127 = vmatpush1.xpose.msra.mxu0 0.0
  %128 = vmatprep.subr.mxu0 0.0
  %129 = vmatpush1.xpose.msra.mxu0 0.0
  %130 = vmatprep.subr.mxu0 0.0
  %131 = vmatpush1.xpose.msra.mxu0 0.0
  %132 = vmatprep.subr.mxu0 0.0
  %133 = vmatpush1.xpose.msra.mxu0 0.0
  %134 = vmatprep.subr.mxu0 0.0
  %135 = vmatpush1.xpose.msra.mxu0 0.0
  %136 = vmatprep.subr.mxu0 0.0
  %137 = vmatpush1.xpose.msra.mxu0 0.0
  %138 = vmatprep.subr.mxu0 0.0
  %139 = vmatpush1.xpose.msra.mxu0 0.0
  %140 = vmatprep.subr.mxu0 0.0
  %141 = vmatpush1.xpose.msra.mxu0 0.0
  %142 = vmatprep.subr.mxu0 0.0
  %143 = vmatpush1.xpose.msra.mxu0 0.0
  %144 = vmatprep.subr.mxu0 0.0
  %145 = vmatpush1.xpose.msra.mxu0 0.0
  %146 = vmatprep.subr.mxu0 0.0
  %147 = vmatpush1.xpose.msra.mxu0 0.0
  %148 = vmatprep.subr.mxu0 0.0
  %149 = vmatpush1.xpose.msra.mxu0 0.0
  %150 = vmatprep.subr.mxu0 0.0
  %151 = vmatpush1.xpose.msra.mxu0 0.0
  %152 = vmatprep.subr.mxu0 0.0
  %153 = vmatpush1.xpose.msra.mxu0 0.0
  %154 = vmatprep.subr.mxu0 0.0
  %155 = vmatpush1.xpose.msra.mxu0 0.0
  %156 = vmatprep.subr.mxu0 0.0
  %157 = vmatpush1.xpose.msra.mxu0 0.0
  %158 = vmatprep.subr.mxu0 0.0
  %159 = vmatpush1.xpose.msra.mxu0 0.0
  %160 = vmatprep.subr.mxu0 0.0
  %161 = vmatpush1.xpose.msra.mxu0 0.0
  %162 = vmatprep.subr.mxu0 0.0
  %163 = vmatpush1.xpose.msra.mxu0 0.0
  %164 = vmatprep.subr.mxu0 0.0
  %165 = vmatpush1.xpose.msra.mxu0 0.0
  %166 = vmatprep.subr.mxu0 0.0
  %167 = vmatpush1.xpose.msra.mxu0 0.0
  %168 = vmatprep.subr.mxu0 0.0
  %169 = vmatpush1.xpose.msra.mxu0 0.0
  %170 = vmatprep.subr.mxu0 0.0
  %171 = vmatpush1.xpose.msra.mxu0 0.0
  %172 = vmatprep.subr.mxu0 0.0
  %173 = vmatpush1.xpose.msra.mxu0 0.0
  %174 = vmatprep.subr.mxu0 0.0
  %175 = vmatpush1.xpose.msra.mxu0 0.0
  %176 = vmatprep.subr.mxu0 0.0
  %177 = vmatpush1.xpose.msra.mxu0 0.0
  %178 = vmatprep.subr.mxu0 0.0
  %179 = vmatpush1.xpose.msra.mxu0 0.0
  %180 = vmatprep.subr.mxu0 0.0
  %181 = vmatpush1.xpose.msra.mxu0 0.0
  %182 = vmatprep.subr.mxu0 0.0
  %183 = vmatpush1.xpose.msra.mxu0 0.0
  %184 = vmatprep.subr.mxu0 0.0
  %185 = vmatpush1.xpose.msra.mxu0 0.0
  %186 = vmatprep.subr.mxu0 0.0
  %187 = vmatpush1.xpose.msra.mxu0 0.0
  %188 = vmatprep.mubr.f32.mxu0 0.0
  %189 = vmatmul.mubr.f32.gmra.mrb[0].mxu0 %v122
  %v190 = vpop.f32.mrb[0].mxu0
  %v191 = vadd.f32 0.0, %v190
  %v192 = vpop.f32.mrb[0].mxu0
  %193 = vdwg.mxu0
  %v194 = vlaneseq
  %v195 = vshrl.u32 %v194, 7
  %v196 = vsub.s32 0, %v195
  %v197 = vrot.slane %v118, %v196
  %v198 = vadd.f32 %v44, %v197
  %v199 = vmul.f32 %v191, 2.0
  %v200 = vsub.f32 %v198, %v199
  %v201 = vlaneseq
  %v202 = vshrl.u32 %v201, 7
  %v203 = vlaneseq
  %v204 = vand.u32 %v203, 127
  %vm205 = vcmp.lt.s32.totalorder %v202, 4
  %vm206 = vcmp.lt.s32.totalorder %v204, 4
  %vm207 = vmand %vm205, %vm206
  %v208 = vsel %vm207, %v200, -1e+30
  %vm209 = vcmask 64512
  %v210 = vsel %vm209, %v208, -inf
  %v211 = vrot.slane %v210, 4
  %v212 = vmax.f32 %v210, %v211
  %v213 = vrot.slane %v212, 2
  %v214 = vmax.f32 %v212, %v213
  %v215 = vrot.slane %v214, 1
  %v216 = vmax.f32 %v214, %v215
  %vm217 = vmxor %vm206, 1
  %vm218 = vmand %vm205, %vm217
  %v219 = vsel %vm218, %v200, 1e+30
  %v220 = vsel %vm209, %v219, inf
  %v221 = vrot.slane %v220, 4
  %v222 = vmin.f32 %v220, %v221
  %v223 = vrot.slane %v222, 2
  %v224 = vmin.f32 %v222, %v223
  %v225 = vrot.slane %v224, 1
  %v226 = vmin.f32 %v224, %v225
  %v227 = vmax.f32 %v216, 0.0
  %v228 = vrsqrt.pop %v227
  %v229 = vmul.f32 %v227, %v228
  %vm230 = vcmp.eq.f32.partialorder %v227, inf
  %v231 = vsel %vm230, %v227, %v229
  %vm232 = vcmp.eq.f32.partialorder %v227, 0.0
  %v233 = vand.u32 %v227, 2147483648
  %v234 = vsel %vm232, %v233, %v231
  %v235 = vmax.f32 %v226, 0.0
  %v236 = vrsqrt.pop %v235
  %v237 = vmul.f32 %v235, %v236
  %vm238 = vcmp.eq.f32.partialorder %v235, inf
  %v239 = vsel %vm238, %v235, %v237
  %vm240 = vcmp.eq.f32.partialorder %v235, 0.0
  %v241 = vand.u32 %v235, 2147483648
  %v242 = vsel %vm240, %v241, %v239
  %v243 = vsub.f32 100.0, %v242
  %v244 = vmax.f32 %v243, 0.0
  %vm245 = vcmask 57344
  %v246 = vsel %vm245, %v234, 0.0
  %247 = vadd.xlane.f32.xlu0 %v246
  %v248 = vpop.xlane.xlu0 %247
  %v249 = vrot.slane %v248, 4
  %v250 = vadd.f32 %v248, %v249
  %v251 = vrot.slane %v250, 2
  %v252 = vadd.f32 %v250, %v251
  %v253 = vrot.slane %v252, 1
  %v254 = vadd.f32 %v252, %v253
  %s255 = vtos %v254
  %s256 = smul.f32 %s255, 0.25
  %v257 = vsel %vm245, %v244, 0.0
  %258 = vadd.xlane.f32.xlu0 %v257
  %v259 = vpop.xlane.xlu0 %258
  %v260 = vrot.slane %v259, 4
  %v261 = vadd.f32 %v259, %v260
  %v262 = vrot.slane %v261, 2
  %v263 = vadd.f32 %v261, %v262
  %v264 = vrot.slane %v263, 1
  %v265 = vadd.f32 %v263, %v264
  %s266 = vtos %v265
  %s267 = smul.f32 %s266, 0.25
  %s268 = sadd.f32 %s256, %s267
  %vm269 = vcmp.eq.s32.totalorder %v202, 0
  %vm270 = vcmp.eq.s32.totalorder %v204, 0
  %vm271 = vmand %vm269, %vm270
  %v272 = vstv %s38
  %v273 = vsel %vm271, %v272, 0.0
  %vm274 = vcmp.eq.s32.totalorder %v204, 1
  %vm275 = vmand %vm269, %vm274
  %s276 = smul.f32 %s268, 0.01
  %v277 = vstv %s276
  %v278 = vsel %vm275, %v277, 0.0
  %v279 = vadd.f32 %v273, %v278
  %280 = vst [vmem:[%s2] sm:$0xff] %v279
  // Predicated region
  $region10: #{combined_loss.1} parent=0 // pred_check
    _
  $region11: #{combined_loss.1} parent=0 // pred_check_branch
    %282 = sbr.rel (0) target = $region13
  $region12: #{combined_loss.1} parent=0 // pred_region
    _
  $region13: #{combined_loss.1} parent=0 // pred_fallthru
    _
  // Predicated region
  $region14: #{combined_loss.1} parent=0 // pred_check
    _
  $region15: #{combined_loss.1} parent=0 // pred_check_branch
    %284 = sbr.rel (0) target = $region17
  $region16: #{combined_loss.1} parent=0 // pred_region
    _
  $region17: #{combined_loss.1} parent=0 // pred_fallthru
    _

</llo_original>
